<compile_context>
chip_gen: v6e
topology: v6e:2x2x1
jax: 0.10.0
libtpu: 0.0.40
codegen_flags: <defaults>
</compile_context>

<pallas_src>
import functools

import jax
import jax.numpy as jnp
from jax.experimental import pallas as pl
from jax.experimental.pallas import tpu as pltpu

d_model = 768

# 32-bit mixing constants (lowbias32 / splitmix-style), pre-wrapped into int32 range.
_GOLD = 0x9E3779B9 - (1 << 32)
_M1 = 0x7FEB352D
_M2 = 0x846CA68B - (1 << 32)


def _round_up(x, m):
    return ((x + m - 1) // m) * m


# ----------------------------------------------------------------------------
# Host-side constant: sinusoidal table exactly as the torch module builds it
# (row 0 stays all zeros).
# ----------------------------------------------------------------------------
def make_pos_table(max_len, dm, dtype=jnp.float32):
    pos = jnp.arange(max_len, dtype=jnp.float32)[:, None]            # (L, 1)
    i = jnp.arange(dm, dtype=jnp.float32)[None, :]                    # (1, D)
    angle = pos / jnp.power(jnp.float32(10000.0), 2.0 * i / dm)       # (L, D)
    even = (jnp.arange(dm) % 2) == 0
    table = jnp.where(even[None, :], jnp.sin(angle), jnp.cos(angle))
    table = table.at[0].set(0.0)
    return table.astype(dtype)


# ----------------------------------------------------------------------------
# Fused kernel: o = dropout(x + pe)
#   seed_ref : SMEM scalar prefetch, shape (1,) int32
#   x_ref    : (bb, ts, D) input tile
#   pe_ref   : (ts, D) positional-table tile (reused across the inner batch axis)
#   o_ref    : (bb, ts, D) output tile
# ----------------------------------------------------------------------------
def _posenc_kernel(seed_ref, x_ref, pe_ref, o_ref, *, training, p, s_total):
    y = x_ref[...].astype(jnp.float32) + pe_ref[...].astype(jnp.float32)[None, :, :]

    if training:
        bb, ts, dm = x_ref.shape
        b0 = pl.program_id(1) * bb          # grid = (seq, batch) -> axis 1 is batch
        s0 = pl.program_id(0) * ts
        ib = jax.lax.broadcasted_iota(jnp.int32, (bb, ts, dm), 0) + b0
        isq = jax.lax.broadcasted_iota(jnp.int32, (bb, ts, dm), 1) + s0
        idm = jax.lax.broadcasted_iota(jnp.int32, (bb, ts, dm), 2)
        # Unique global element index -> mask is independent of the tiling.
        idx = (ib * jnp.int32(s_total) + isq) * jnp.int32(dm) + idm

        # Stateless 32-bit mix (int32 mults wrap; logical right shift emulated by
        # arithmetic shift + mask).  Pure VPU work -> free filler under the DMA.
        h = idx + seed_ref[0] * jnp.int32(_GOLD)
        h = jnp.bitwise_xor(h, jnp.bitwise_and(h >> 16, jnp.int32(0xFFFF)))
        h = h * jnp.int32(_M1)
        h = jnp.bitwise_xor(h, jnp.bitwise_and(h >> 15, jnp.int32(0x1FFFF)))
        h = h * jnp.int32(_M2)
        h = jnp.bitwise_xor(h, jnp.bitwise_and(h >> 16, jnp.int32(0xFFFF)))
        r = jnp.bitwise_and(h, jnp.int32(0x00FFFFFF))                 # uniform in [0, 2^24)

        thresh = jnp.int32(int(round(p * float(1 << 24))))
        keep = r >= thresh
        y = jnp.where(keep, y * jnp.float32(1.0 / (1.0 - p)), jnp.float32(0.0))

    o_ref[...] = y.astype(o_ref.dtype)


# ----------------------------------------------------------------------------
# Wrapper (mirrors PositionalEncoding.forward).
# ----------------------------------------------------------------------------
def positional_encoding(enc_inputs, pos_table, *, dropout_p=0.1, training=False, seed=0):
    """enc_inputs: (B, S, d_model); pos_table: (max_len, d_model)."""
    B, S, D = enc_inputs.shape
    assert pos_table.shape[0] >= S and pos_table.shape[1] == D

    # Ragged-S guard: pad seq dim to a multiple of 8 so tiling never degenerates to one
    # giant (VMEM-blowing) block; output is sliced back below.
    S_pad = _round_up(S, 8)
    x = enc_inputs
    if S_pad != S:
        x = jnp.pad(enc_inputs, ((0, 0), (0, S_pad - S), (0, 0)))

    # pe stream follows the activation dtype (no-op for f32; halves pe bytes for bf16).
    pe = pos_table if pos_table.dtype == enc_inputs.dtype else pos_table.astype(enc_inputs.dtype)

    # Tiling: lane dim = full 768 (= 6*128, lane-dense stores); seq tile <= 512 rows;
    # batch blocked so each grid step streams ~2048 rows (~6 MiB f32) per buffer.
    ts = min(S_pad, 512)
    seq_tiles = pl.cdiv(S_pad, ts)
    target_rows = 2048
    bb = max(1, min(B, target_rows // ts))
    batch_tiles = pl.cdiv(B, bb)

    # Guarantee >= 2 grid steps so megacore / v7x dual-TC sharding always has work.
    if seq_tiles == 1 and batch_tiles == 1:
        if B >= 2:
            bb = (B + 1) // 2
            batch_tiles = pl.cdiv(B, bb)
        elif S_pad >= 16:
            ts = max(8, _round_up(S_pad // 2, 8))
            seq_tiles = pl.cdiv(S_pad, ts)

    grid = (seq_tiles, batch_tiles)   # batch innermost -> pe block reused across batch

    seed_arr = jnp.asarray([seed], dtype=jnp.int32)
    kernel = functools.partial(_posenc_kernel, training=training,
                               p=float(dropout_p), s_total=S_pad)

    out = pl.pallas_call(
        kernel,
        out_shape=jax.ShapeDtypeStruct((B, S_pad, D), enc_inputs.dtype),
        grid_spec=pltpu.PrefetchScalarGridSpec(
            num_scalar_prefetch=1,            # dropout seed lives in SMEM
            grid=grid,
            in_specs=[
                pl.BlockSpec((bb, ts, D), lambda s, b, seed_ref: (b, s, 0)),
                pl.BlockSpec((ts, D),     lambda s, b, seed_ref: (s, 0)),
            ],
            out_specs=pl.BlockSpec((bb, ts, D), lambda s, b, seed_ref: (b, s, 0)),
        ),
        compiler_params=pltpu.CompilerParams(
            dimension_semantics=("parallel", "parallel"),
            vmem_limit_bytes=48 * 1024 * 1024,   # fits v7x 64 MiB physical; lifts v5e 16 MiB default
        ),
        # enc_inputs -> output (scalar-prefetch arg counts as input 0), matches torch's
        # in-place `enc_inputs +=`; avoids a second (B, S, 768) HBM buffer.
        input_output_aliases={1: 0},
    )(seed_arr, x, pe)

    return out if S_pad == S else out[:, :S, :]


# ----------------------------------------------------------------------------
# Pure-JAX reference (eval mode) for the correctness check.
# ----------------------------------------------------------------------------
def reference_eval(enc_inputs, pos_table):
    S = enc_inputs.shape[1]
    return enc_inputs + pos_table[:S][None, :, :]


if __name__ == "__main__":
    B, S = 2, 8
    key = jax.random.PRNGKey(0)
    enc_inputs = jax.random.normal(key, (B, S, d_model), dtype=jnp.float32)

    # Same defaults as the torch module (max_len=5000, d_model=768).
    pos_table = make_pos_table(5000, d_model)

    # Reference computed before the kernel calls (output aliasing should never clobber
    # a live user buffer, but keep the test independent of that).
    ref = reference_eval(enc_inputs, pos_table)

    # --- eval mode (dropout is identity): exact check against the reference ---
    out = positional_encoding(enc_inputs, pos_table, training=False)
    out = jax.block_until_ready(out)
    assert out.shape == (B, S, d_model)
    assert jnp.allclose(out, ref, rtol=1e-5, atol=1e-5)

    # --- training mode: in-kernel hash-based dropout mask ---
    p = 0.1
    out_tr = positional_encoding(enc_inputs, pos_table, dropout_p=p, training=True, seed=1234)
    out_tr = jax.block_until_ready(out_tr)
    expected_kept = ref / (1.0 - p)
    dropped = out_tr == 0.0
    elem_ok = jnp.where(dropped, True,
                        jnp.isclose(out_tr, expected_kept, rtol=1e-4, atol=1e-4))
    assert bool(elem_ok.all())
    drop_frac = float(jnp.mean(dropped.astype(jnp.float32)))
    assert 0.02 <= drop_frac <= 0.25, f"unexpected dropout fraction {drop_frac}"

    print("KERNEL_OK")
</pallas_src>

<mosaic_0001>
module attributes {stable_mosaic.version = 11 : i64} {
  func.func @_posenc_kernel(%arg0: i32, %arg1: i32, %arg2: memref<1xi32, #tpu.memory_space<smem>>, %arg3: memref<1x8x768xf32, #tpu.memory_space<vmem>>, %arg4: memref<8x768xf32, #tpu.memory_space<vmem>>, %arg5: memref<1x8x768xf32, #tpu.memory_space<vmem>>) attributes {dimension_semantics = [#tpu.dimension_semantics<parallel>, #tpu.dimension_semantics<parallel>], iteration_bounds = array<i64: 1, 2>, scalar_prefetch = 1 : i64, scratch_operands = 0 : i64, tpu.core_type = #tpu.core_type<tc>, window_params = [{transform_indices = @transform_0, window_bounds = array<i64: 1, 8, 768>}, {transform_indices = @transform_1, window_bounds = array<i64: 8, 768>}, {transform_indices = @transform_2, window_bounds = array<i64: 1, 8, 768>}]} {
    %c0 = arith.constant 0 : index
    %c0_0 = arith.constant 0 : index
    %c0_1 = arith.constant 0 : index
    %0 = vector.load %arg3[%c0, %c0_0, %c0_1] : memref<1x8x768xf32, #tpu.memory_space<vmem>>, vector<1x8x768xf32>
    %c0_2 = arith.constant 0 : index
    %c0_3 = arith.constant 0 : index
    %1 = vector.load %arg4[%c0_2, %c0_3] : memref<8x768xf32, #tpu.memory_space<vmem>>, vector<8x768xf32>
    %2 = vector.shape_cast %1 : vector<8x768xf32> to vector<1x8x768xf32>
    %3 = arith.addf %0, %2 : vector<1x8x768xf32>
    %c0_4 = arith.constant 0 : index
    %c0_5 = arith.constant 0 : index
    %c0_6 = arith.constant 0 : index
    %4 = vector.load %arg5[%c0_4, %c0_5, %c0_6] : memref<1x8x768xf32, #tpu.memory_space<vmem>>, vector<1x8x768xf32>
    tpu.vector_store %arg5[%c0_4, %c0_5, %c0_6], %3 {strides = array<i32>} : memref<1x8x768xf32, #tpu.memory_space<vmem>>, vector<1x8x768xf32>,
    return
  }
  func.func @transform_0(%arg0: i32, %arg1: i32, %arg2: memref<1xi32, #tpu.memory_space<smem>>) -> (i32, i32, i32) {
    %c0_i32 = arith.constant 0 : i32
    %c0_i32_0 = arith.constant 0 : i32
    return %arg1, %arg0, %c0_i32 : i32, i32, i32
  }
  func.func @transform_1(%arg0: i32, %arg1: i32, %arg2: memref<1xi32, #tpu.memory_space<smem>>) -> (i32, i32) {
    %c0_i32 = arith.constant 0 : i32
    %c0_i32_0 = arith.constant 0 : i32
    return %arg0, %c0_i32 : i32, i32
  }
  func.func @transform_2(%arg0: i32, %arg1: i32, %arg2: memref<1xi32, #tpu.memory_space<smem>>) -> (i32, i32, i32) {
    %c0_i32 = arith.constant 0 : i32
    %c0_i32_0 = arith.constant 0 : i32
    return %arg1, %arg0, %c0_i32 : i32, i32, i32
  }
}

</mosaic_0001>

<llo_original>
// kernel: tpu_custom_call.1
$region0: #{tpu_custom_call.1}
  #allocation0 [shape = 'u32[]', space=smem, size = 0x4, offset = 0x4, fixed_abs, tag = 'smem constant byte address 0x4 - core index']
  #allocation1 [shape = 'u32[144,128]{1,0:T(1,128)}', space=vmem, size = 0x12000, scoped, tag = 'internal scratch']
  #allocation2 [shape = 's32[1]{0}', space=sflag, size = 0x4, scoped, tag = 'scoped memory for tpu_custom_call.1']
  #allocation3 [shape = 's32[1]{0:T(128)S(6)}', space=smem, size = 0x200, scoped, tag = 'prefetched SMEM operand 0']
  %s0 = inlined_call_operand.<no memory space> [shape: s32[1], index: 0, kind: input, shape index: {}]
  %s1 = inlined_call_operand.hbm [shape: f32[2,8,768], index: 1, kind: input, shape index: {}, may-alias: {1,3}]
  %s2 = inlined_call_operand.hbm [shape: f32[5000,768], index: 2, kind: input, shape index: {}]
  %s3 = inlined_call_operand.hbm [shape: f32[2,8,768], index: 3, kind: output, shape index: {}, may-alias: {1,3}]
  %s4 = sld [smem:[#allocation0]]
  $region49: #{tpu_custom_call.1} parent=0
    _
  %s6 = ssub.s32 1, %s4
  %s7 = scalar_select 0, %s6, %s4
  %8 = sst [smem:[#allocation3]] %s0
  $region1: #{tpu_custom_call.1} parent=0
    #allocation4 [shape = 'u8[49152]{0}', space=vmem, size = 0xc000, scoped, tag = 'input window, operand 1']
    #allocation5 [shape = 's32[2]{0}', space=sflag, size = 0x8, scoped, tag = 'scoped memory for tpu_custom_call.1']
    #allocation6 [shape = 's32[2]{0}', space=sflag, size = 0x8, scoped, tag = 'scoped memory for tpu_custom_call.1']
    #allocation7 [shape = 'u8[24576]{0}', space=vmem, size = 0x6000, scoped, tag = 'input window, operand 2, single buffered']
    #allocation8 [shape = 's32[1]{0}', space=sflag, size = 0x4, scoped, tag = 'scoped memory for tpu_custom_call.1']
    #allocation9 [shape = 'u8[49152]{0}', space=vmem, size = 0xc000, scoped, tag = 'output window, operand 0']
    %9 = vsyncpa [#allocation5], 0
    %s10 = scalar_lea.sflag [#allocation5], 1
    %11 = vsyncpa %s10, 0
    %12 = vsyncpa [#allocation8], 0
    %13 = vsyncpa [#allocation6], 0
    %s14 = scalar_lea.sflag [#allocation6], 1
    %15 = vsyncpa %s14, 0
    loop: start=0, step=1, limit=4
    $region2: #{tpu_custom_call.1} parent=1 // loop_pre_header
      _
    $region3: #{tpu_custom_call.1} parent=1 // loop_header
      %s17 = sphi 0, %s21
      %p18 = scmp.ge.s32.totalorder %s17, 4
      %s24 = sphi 0, %s36
      %s25 = sphi 0, %s32
      %s26 = sphi 0, %s24
      %s27 = sphi 0, %s25
      %s28 = sphi 0, %s26
      %s29 = sphi 0, %s27
      %s41 = sphi 0, %s43
      %s44 = sphi 0, %s41
      %s45 = sphi 0, %s44
      %s61 = sphi 0, %s45
      %s67 = sphi 0, %s69
      %s70 = sphi 0, %s67
      %s71 = sphi 0, %s70
      %s87 = sphi 0, %s71
      %s95 = sphi 0, %s97
      %s98 = sphi 0, %s95
      %s99 = sphi 0, %s98
      %s115 = sphi 0, %s99
    $region4: #{tpu_custom_call.1} parent=1 // loop_header_branch
      %20 = sbr.rel (%p18) target = $region8
    $region5: #{tpu_custom_call.1} parent=1 // loop_body
      %s22 = ssub.s32 %s17, 1
      %s23 = ssub.s32 %s17, 2
      %s30 = sadd.s32 1, %s25
      %p31 = scmp.ge.s32.totalorder %s30, 2
      %s32 = scalar_select %p31, 0, %s30
      %s33 = sadd.s32 1, %s24
      %s34 = scalar_select %p31, %s33, %s24
      %p35 = scmp.ge.s32.totalorder %s34, 1
      %s36 = scalar_select %p35, 0, %s34
      %s37 = ssub.s32 %s25, %s32
      %s38 = ssub.s32 %s24, %s36
      %s39 = sor.u32 %s37, %s38
      %p40 = scmp.eq.s32.totalorder %s39, 0
      %s42 = sadd.s32 %s41, 1
      %s43 = scalar_select %p40, %s41, %s42
      %p46 = pneg %p40
      %p47 = scmp.eq.s32.totalorder %s17, 1
      %p48 = por %p46, %p47
      %p49 = scmp.ne.s32.totalorder %s41, %s44
      %p50 = scmp.eq.s32.totalorder %s17, 0
      %p51 = por %p49, %p50
      %p52 = scmp.ne.s32.totalorder %s41, %s44
      %p53 = scmp.eq.s32.totalorder %s22, 1
      %p54 = por %p52, %p53
      %p55 = scmp.ne.s32.totalorder %s44, %s45
      %p56 = scmp.eq.s32.totalorder %s22, 0
      %p57 = por %p55, %p56
      %p58 = scmp.ne.s32.totalorder %s44, %s45
      %p59 = scmp.eq.s32.totalorder %s23, 1
      %p60 = por %p58, %p59
      %p62 = scmp.ne.s32.totalorder %s45, %s61
      %p63 = scmp.eq.s32.totalorder %s23, 0
      %p64 = por %p62, %p63
      %s65 = ssub.s32 %s24, %s36
      %p66 = scmp.eq.s32.totalorder %s65, 0
      %s68 = sadd.s32 %s67, 1
      %s69 = scalar_select %p66, %s67, %s68
      %p72 = pneg %p66
      %p73 = scmp.eq.s32.totalorder %s17, 1
      %p74 = por %p72, %p73
      %p75 = scmp.ne.s32.totalorder %s67, %s70
      %p76 = scmp.eq.s32.totalorder %s17, 0
      %p77 = por %p75, %p76
      %p78 = scmp.ne.s32.totalorder %s67, %s70
      %p79 = scmp.eq.s32.totalorder %s22, 1
      %p80 = por %p78, %p79
      %p81 = scmp.ne.s32.totalorder %s70, %s71
      %p82 = scmp.eq.s32.totalorder %s22, 0
      %p83 = por %p81, %p82
      %p84 = scmp.ne.s32.totalorder %s70, %s71
      %p85 = scmp.eq.s32.totalorder %s23, 1
      %p86 = por %p84, %p85
      %p88 = scmp.ne.s32.totalorder %s71, %s87
      %p89 = scmp.eq.s32.totalorder %s23, 0
      %p90 = por %p88, %p89
      %s91 = ssub.s32 %s25, %s32
      %s92 = ssub.s32 %s24, %s36
      %s93 = sor.u32 %s91, %s92
      %p94 = scmp.eq.s32.totalorder %s93, 0
      %s96 = sadd.s32 %s95, 1
      %s97 = scalar_select %p94, %s95, %s96
      %p100 = pneg %p94
      %p101 = scmp.eq.s32.totalorder %s17, 1
      %p102 = por %p100, %p101
      %p103 = scmp.ne.s32.totalorder %s95, %s98
      %p104 = scmp.eq.s32.totalorder %s17, 0
      %p105 = por %p103, %p104
      %p106 = scmp.ne.s32.totalorder %s95, %s98
      %p107 = scmp.eq.s32.totalorder %s22, 1
      %p108 = por %p106, %p107
      %p109 = scmp.ne.s32.totalorder %s98, %s99
      %p110 = scmp.eq.s32.totalorder %s22, 0
      %p111 = por %p109, %p110
      %p112 = scmp.ne.s32.totalorder %s98, %s99
      %p113 = scmp.eq.s32.totalorder %s23, 1
      %p114 = por %p112, %p113
      %p116 = scmp.ne.s32.totalorder %s99, %s115
      %p117 = scmp.eq.s32.totalorder %s23, 0
      %p118 = por %p116, %p117
      %p119 = scmp.le.s32.totalorder 1, %s17
      %p120 = scmp.lt.s32.totalorder %s17, 3
      %p121 = pnand %p119, %p120
      %p122 = pneg %p121
      // Predicated region
      $region9: #{tpu_custom_call.1} parent=5 // pred_check
        _
      $region10: #{tpu_custom_call.1} parent=5 // pred_check_branch
        %124 = sbr.rel (%p121) target = $region12
      $region11: #{tpu_custom_call.1} parent=5 // pred_region
        %s125 = ssub.s32 %s17, 1
        // Predicated region
        $region13: #{tpu_custom_call.1} parent=11 // pred_check
          %p126 = pneg %p83
        $region14: #{tpu_custom_call.1} parent=11 // pred_check_branch
          %128 = sbr.rel (%p126) target = $region16
        $region15: #{tpu_custom_call.1} parent=11 // pred_region
          %s130 = ssub.s32 768, 768
          %131 = vsyncadd [#allocation8], %s130
          %s132 = smul.addr %s26, 6
          %s133 = smul.addr %s132, 128
          %s134 = scalar_lea.hbm %s2, %s133
          %s136 = sshll.u32 [#allocation7], 4
          %s137 = int_to_ptr.vmem [resolvable:$true] %s136
          %139 = dma.hbm_to_vmem [thread:$0]  %s134, 768, %s137, [#allocation8]
        $region16: #{tpu_custom_call.1} parent=11 // pred_fallthru
          _
      $region12: #{tpu_custom_call.1} parent=5 // pred_fallthru
        _
      %p140 = scmp.lt.s32.totalorder %s17, 2
      // Predicated region
      $region17: #{tpu_custom_call.1} parent=5 // pred_check
        %p141 = pneg %p140
      $region18: #{tpu_custom_call.1} parent=5 // pred_check_branch
        %143 = sbr.rel (%p141) target = $region20
      $region19: #{tpu_custom_call.1} parent=5 // pred_region
        // Predicated region
        $region21: #{tpu_custom_call.1} parent=19 // pred_check
          %p144 = pneg %p51
        $region22: #{tpu_custom_call.1} parent=19 // pred_check_branch
          %146 = sbr.rel (%p144) target = $region24
        $region23: #{tpu_custom_call.1} parent=19 // pred_region
          %s147 = sand.u32 %s41, 1
          %s148 = scalar_lea.sflag [#allocation5], %s147
          %s149 = sand.u32 %s41, 1
          %s150 = smul.addr %s149, 48
          %s151 = scalar_lea.vmem [#allocation4], %s150
          %s153 = ssub.s32 768, 768
          %154 = vsyncadd %s148, %s153
          %s155 = smul.addr %s24, 6
          %s156 = smul.addr %s25, 6
          %s157 = sadd.s32 %s155, %s156
          %s158 = smul.addr %s157, 128
          %s159 = scalar_lea.hbm %s1, %s158
          %s161 = sshll.u32 %s151, 4
          %s162 = int_to_ptr.vmem [resolvable:$true] %s161
          %164 = dma.hbm_to_vmem [thread:$0]  %s159, 768, %s162, %s148
        $region24: #{tpu_custom_call.1} parent=19 // pred_fallthru
          _
      $region20: #{tpu_custom_call.1} parent=5 // pred_fallthru
        _
      %p165 = scmp.le.s32.totalorder 1, %s17
      %p166 = scmp.lt.s32.totalorder %s17, 3
      %p167 = pnand %p165, %p166
      %p168 = pneg %p167
      // Predicated region
      $region25: #{tpu_custom_call.1} parent=5 // pred_check
        _
      $region26: #{tpu_custom_call.1} parent=5 // pred_check_branch
        %170 = sbr.rel (%p167) target = $region28
      $region27: #{tpu_custom_call.1} parent=5 // pred_region
        %s171 = ssub.s32 %s17, 1
        %s172 = sand.u32 %s44, 1
        %s173 = scalar_lea.sflag [#allocation5], %s172
        %s174 = sand.u32 %s44, 1
        %s175 = smul.addr %s174, 48
        %s176 = scalar_lea.vmem [#allocation4], %s175
        // Predicated region
        $region29: #{tpu_custom_call.1} parent=27 // pred_check
          %p177 = pneg %p57
        $region30: #{tpu_custom_call.1} parent=27 // pred_check_branch
          %179 = sbr.rel (%p177) target = $region32
        $region31: #{tpu_custom_call.1} parent=27 // pred_region
          %180 = dma.done %s173, 768
        $region32: #{tpu_custom_call.1} parent=27 // pred_fallthru
          _
        // Predicated region
        $region33: #{tpu_custom_call.1} parent=27 // pred_check
          %p181 = pneg %p83
        $region34: #{tpu_custom_call.1} parent=27 // pred_check_branch
          %183 = sbr.rel (%p181) target = $region36
        $region35: #{tpu_custom_call.1} parent=27 // pred_region
          %184 = dma.done [#allocation8], 768
        $region36: #{tpu_custom_call.1} parent=27 // pred_fallthru
          _
        %s185 = sand.u32 %s44, 1
        %s186 = scalar_lea.sflag [#allocation5], %s185
        %s187 = sand.u32 %s44, 1
        %s188 = smul.addr %s187, 48
        %s189 = scalar_lea.vmem [#allocation4], %s188
        %p190 = pneg %p57
        %p191 = pneg %p54
        %p192 = pneg %p83
        %p193 = pneg %p80
        %p194 = pneg %p111
        %p195 = pneg %p108
        %s196 = sand.u32 %s98, 1
        %s197 = scalar_lea.sflag [#allocation6], %s196
        %s198 = sand.u32 %s98, 1
        %s199 = smul.addr %s198, 48
        %s200 = scalar_lea.vmem [#allocation9], %s199
        %v201 = vld [vmem:[%s176] sm:$0xff]
        %v202 = vld [vmem:[%s176 + $0x8] sm:$0xff]
        %v203 = vld [vmem:[%s176 + $0x10] sm:$0xff]
        %v204 = vld [vmem:[%s176 + $0x18] sm:$0xff]
        %v205 = vld [vmem:[%s176 + $0x20] sm:$0xff]
        %v206 = vld [vmem:[%s176 + $0x28] sm:$0xff]
        %v207 = vld [vmem:[#allocation7] sm:$0xff]
        %v208 = vld [vmem:[#allocation7 + $0x8] sm:$0xff]
        %v209 = vld [vmem:[#allocation7 + $0x10] sm:$0xff]
        %v210 = vld [vmem:[#allocation7 + $0x18] sm:$0xff]
        %v211 = vld [vmem:[#allocation7 + $0x20] sm:$0xff]
        %v212 = vld [vmem:[#allocation7 + $0x28] sm:$0xff]
        %v213 = vadd.f32 %v201, %v207
        %v214 = vadd.f32 %v202, %v208
        %v215 = vadd.f32 %v203, %v209
        %v216 = vadd.f32 %v204, %v210
        %v217 = vadd.f32 %v205, %v211
        %v218 = vadd.f32 %v206, %v212
        %219 = vst [vmem:[%s200] sm:$0xff] %v213
        %220 = vst [vmem:[%s200 + $0x8] sm:$0xff] %v214
        %221 = vst [vmem:[%s200 + $0x10] sm:$0xff] %v215
        %222 = vst [vmem:[%s200 + $0x18] sm:$0xff] %v216
        %223 = vst [vmem:[%s200 + $0x20] sm:$0xff] %v217
        %224 = vst [vmem:[%s200 + $0x28] sm:$0xff] %v218
        %s225 = sand.u32 %s98, 1
        %s226 = scalar_lea.sflag [#allocation6], %s225
        %s227 = sand.u32 %s98, 1
        %s228 = smul.addr %s227, 48
        %s229 = scalar_lea.vmem [#allocation9], %s228
        // Predicated region
        $region37: #{tpu_custom_call.1} parent=27 // pred_check
          %p230 = pneg %p108
        $region38: #{tpu_custom_call.1} parent=27 // pred_check_branch
          %232 = sbr.rel (%p230) target = $region40
        $region39: #{tpu_custom_call.1} parent=27 // pred_region
          %s234 = ssub.s32 768, 768
          %235 = vsyncadd %s226, %s234
          %s236 = smul.addr %s26, 6
          %s237 = smul.addr %s27, 6
          %s238 = sadd.s32 %s236, %s237
          %s239 = smul.addr %s238, 128
          %s240 = scalar_lea.hbm %s3, %s239
          %s242 = sshll.u32 %s229, 4
          %s243 = int_to_ptr.vmem [resolvable:$true] %s242
          %245 = dma.vmem_to_hbm [thread:$0]  %s243, 768, %s240, %s226
        $region40: #{tpu_custom_call.1} parent=27 // pred_fallthru
          _
      $region28: #{tpu_custom_call.1} parent=5 // pred_fallthru
        _
      %p246 = scmp.le.s32.totalorder 2, %s17
      // Predicated region
      $region41: #{tpu_custom_call.1} parent=5 // pred_check
        %p247 = pneg %p246
      $region42: #{tpu_custom_call.1} parent=5 // pred_check_branch
        %249 = sbr.rel (%p247) target = $region44
      $region43: #{tpu_custom_call.1} parent=5 // pred_region
        %s250 = ssub.s32 %s17, 2
        // Predicated region
        $region45: #{tpu_custom_call.1} parent=43 // pred_check
          %p251 = pneg %p114
        $region46: #{tpu_custom_call.1} parent=43 // pred_check_branch
          %253 = sbr.rel (%p251) target = $region48
        $region47: #{tpu_custom_call.1} parent=43 // pred_region
          %s254 = sand.u32 %s99, 1
          %s255 = scalar_lea.sflag [#allocation6], %s254
          %s256 = sand.u32 %s99, 1
          %s257 = smul.addr %s256, 48
          %s258 = scalar_lea.vmem [#allocation9], %s257
          %259 = dma.done %s255, 768
        $region48: #{tpu_custom_call.1} parent=43 // pred_fallthru
          _
      $region44: #{tpu_custom_call.1} parent=5 // pred_fallthru
        _
    $region6: #{tpu_custom_call.1} parent=1 // loop_footer
      %s21 = sadd.s32 1, %s17
    $region7: #{tpu_custom_call.1} parent=1 // loop_footer_branch
      %16 = sbr.rel target = $region3
    $region8: #{tpu_custom_call.1} parent=1 // loop_exit
      _
    %260 = vsyncpa [#allocation5], 1
    %s261 = scalar_lea.sflag [#allocation5], 1
    %262 = vsyncpa %s261, 1
    %263 = vsyncpa [#allocation8], 1
    %264 = vsyncpa [#allocation6], 1
    %s265 = scalar_lea.sflag [#allocation6], 1
    %266 = vsyncpa %s265, 1

</llo_original>
